<compile_context>
chip_gen: v6e
topology: v6e:2x2x1
jax: 0.10.0
libtpu: 0.0.40
codegen_flags: <defaults>
</compile_context>

<pallas_src>
import jax
import jax.numpy as jnp
from jax.experimental import pallas as pl
from jax.experimental.pallas import tpu as pltpu


def _hbm_copy_kernel(x_hbm_ref, o_hbm_ref, copy_sem):
    # Single whole-array HBM -> HBM DMA; no VMEM round trip, no grid.
    cp = pltpu.make_async_copy(x_hbm_ref, o_hbm_ref, copy_sem)
    cp.start()
    cp.wait()


def _pallas_hbm_copy(x: jax.Array) -> jax.Array:
    """Bit-exact identity copy done as one DMA between HBM buffers."""
    if x.size == 0:
        # Degenerate launch avoidance (correctness concern from review).
        return x
    return pl.pallas_call(
        _hbm_copy_kernel,
        out_shape=jax.ShapeDtypeStruct(x.shape, x.dtype),
        in_specs=[pl.BlockSpec(memory_space=pl.ANY)],
        out_specs=pl.BlockSpec(memory_space=pl.ANY),
        scratch_shapes=[pltpu.SemaphoreType.DMA(())],
        compiler_params=pltpu.CompilerParams(has_side_effects=True),
    )(x)


class NNTrainableModuleJax:
    """JAX/Pallas mirror of NNTrainableModule's tensor-level behavior."""

    CACHE_NAMES = ["common", "loss_dict", "metric_dict",
                   "moniter_dict", "hist_dict", "image_dict"]

    def __init__(self, force_tpu_roundtrip: bool = False):
        # register_buffer("_device_indicator", torch.zeros(1), persistent=False)
        self._device_indicator = jnp.zeros((1,), dtype=jnp.float32)
        # caches are plain python dicts
        for name in self.CACHE_NAMES:
            setattr(self, name, dict())
        self.optim_state = 0
        # Debug knob: when True, route the data through the Pallas HBM->HBM
        # DMA kernel instead of returning the input untouched.
        self.force_tpu_roundtrip = force_tpu_roundtrip

    # --- cache bookkeeping (host-side, matches NNCacheImpl semantics) ---
    def reset_cache(self, cache_name: str = "common"):
        setattr(self, cache_name, dict())

    def update_cache(self, cache_name: str = "common", **kwargs):
        getattr(self, cache_name).update(**kwargs)

    def reset_loss_dict(self):
        self.reset_cache("loss_dict")

    def reset_metric_dict(self):
        self.reset_cache("metric_dict")

    # --- forward ---
    def forward(self, x: jax.Array):
        # Exactly what the PyTorch forward does: reset the two caches.
        self.reset_loss_dict()
        self.reset_metric_dict()
        # The PyTorch forward performs no tensor math and returns None; the
        # performance-optimal hot path is to return the input with zero bytes
        # of HBM traffic and no kernel launch.
        if not self.force_tpu_roundtrip:
            return x
        # Debug / verification path: bit-exact identity via one HBM->HBM DMA.
        return _pallas_hbm_copy(x)


if __name__ == "__main__":
    key = jax.random.PRNGKey(0)
    x = jax.random.normal(key, (2, 4, 16, 16), dtype=jnp.float32)

    # 1) Default hot path: no kernel launch, input returned untouched.
    module = NNTrainableModuleJax()
    module.update_cache("loss_dict", dummy=1.0)
    module.update_cache("metric_dict", dummy=2.0)
    y_fast = module.forward(x)
    assert y_fast is x  # zero-copy: output aliases the input buffer
    assert module.loss_dict == {} and module.metric_dict == {}
    assert bool(jnp.all(module._device_indicator == 0.0))

    # 2) Debug round-trip path: exercise the Pallas HBM->HBM DMA kernel once.
    module_dbg = NNTrainableModuleJax(force_tpu_roundtrip=True)
    y = module_dbg.forward(x)
    y = jax.block_until_ready(y)

    # Verify semantics: data is untouched, caches were reset.
    assert y.shape == x.shape and y.dtype == x.dtype
    assert bool(jnp.all(y == x))
    assert module_dbg.loss_dict == {} and module_dbg.metric_dict == {}

    print("KERNEL_OK")
</pallas_src>

<mosaic_0001>
module attributes {stable_mosaic.version = 11 : i64} {
  func.func @_hbm_copy_kernel(%arg0: memref<2x4x16x16xf32, #tpu.memory_space<any>>, %arg1: memref<2x4x16x16xf32, #tpu.memory_space<any>>, %arg2: memref<!tpu.dma_semaphore, #tpu.memory_space<semaphore_mem>>) attributes {dimension_semantics = [], scalar_prefetch = 0 : i64, scratch_operands = 1 : i64, tpu.core_type = #tpu.core_type<tc>} {
    tpu.enqueue_dma source(%arg0 : memref<2x4x16x16xf32, #tpu.memory_space<any>>) target(%arg1 : memref<2x4x16x16xf32, #tpu.memory_space<any>>) target_semaphore(%arg2 : memref<!tpu.dma_semaphore, #tpu.memory_space<semaphore_mem>>)
    tpu.wait_dma2 semaphore(%arg2 : memref<!tpu.dma_semaphore, #tpu.memory_space<semaphore_mem>>) src(%arg0 : memref<2x4x16x16xf32, #tpu.memory_space<any>>) dst(%arg1 : memref<2x4x16x16xf32, #tpu.memory_space<any>>)
    return
  }
}

</mosaic_0001>

<llo_original>
// kernel: tpu_custom_call.1
$region0: #{tpu_custom_call.1}
  #allocation0 [shape = 'u32[]', space=smem, size = 0x4, offset = 0x4, fixed_abs, tag = 'smem constant byte address 0x4 - core index']
  #allocation1 [shape = 'u32[144,128]{1,0:T(1,128)}', space=vmem, size = 0x12000, scoped, tag = 'internal scratch']
  #allocation2 [shape = 's32[1]{0}', space=sflag, size = 0x4, scoped, tag = 'scratch operand']
  #allocation3 [shape = 's32[]', space=sflag, size = 0x4, offset = 0, fixed_abs, tag = 'sflag constant byte address 0x0 - dummy sync flag']
  #allocation4 [shape = 'u32[0]{0}', space=smem, size = 0, offset = 0, fixed_abs, tag = 'smem constant byte address 0x0 - null']
  %s0 = inlined_call_operand.hbm [shape: f32[2,4,16,16], index: 0, kind: input, shape index: {}]
  %s1 = inlined_call_operand.hbm [shape: f32[2,4,16,16], index: 1, kind: output, shape index: {}]
  %s2 = sld [smem:[#allocation0]]
  $region2: #{tpu_custom_call.1} parent=0
    _
  %s4 = ssub.s32 1, %s2
  %s5 = scalar_select 0, %s4, %s2
  %s7 = sshll.u32 1, 14
  %s8 = sxor.u32 4294967295, %s7
  %12 = dma.general %s0, 2048, %s1, [#allocation2], 131072, [#allocation4], 0, 0
  %s13 = smul.u32 2, 4
  %s14 = smul.u32 %s13, 16
  %s15 = smul.u32 %s14, 1
  %s16 = sshll.u32 %s15, 4
  %17 = dma.done [#allocation2], %s16
  %18 = vsyncmov [#allocation2]
  %s19 = vpop.sfrf %18
  %p20 = scmp.eq.s32.totalorder %s19, 0
  %p21 = pneg %p20
  %23 = shalt.err (%p21)

</llo_original>
